<compile_context>
chip_gen: v6e
topology: v6e:2x2x1
jax: 0.10.0
libtpu: 0.0.40
codegen_flags: <defaults>
</compile_context>

<pallas_src>
import numpy as np
import jax
import jax.numpy as jnp
from jax import lax
from jax.experimental import pallas as pl
from jax.experimental.pallas import tpu as pltpu


# ----------------------------------------------------------------- constants
_VMEM_LIMIT = 32 * 1024 * 1024        # explicit scoped-VMEM limit (safe on v5e/v6e/v7x)
_STREAM_BUDGET = 20 * 1024 * 1024     # budget for double-buffered streaming blocks


# ----------------------------------------------------------------- utilities
def _round_up(x, m):
    return ((x + m - 1) // m) * m


def _pick_row_tile(rows, flat, E, G, in_bytes, gates_bytes, fc):
    # Double-buffered inputs (obs, ext) + output (gates) + in-kernel intermediates.
    per_row = 2 * (flat + E) * in_bytes + 2 * G * gates_bytes + 4 * (fc + G)
    tr = _STREAM_BUDGET // max(per_row, 1)
    tr = min(tr, 512, _round_up(rows, 8))
    tr = max(8, (tr // 8) * 8)
    return tr


def _pick_time_chunk(T, Bt, H, gates_bytes):
    # Double-buffered gx input block + y output block per time chunk.
    per_step = 2 * Bt * (4 * H * gates_bytes + H * 4)
    tc = _STREAM_BUDGET // max(per_step, 1)
    return max(1, min(tc, T, 128))


def _pick_batch_tile(Bp, pad_mult, batch_tile=None):
    if batch_tile is not None:
        assert Bp % batch_tile == 0 and batch_tile % pad_mult == 0
        return batch_tile
    half = Bp // 2
    if Bp % 2 == 0 and half % pad_mult == 0:
        return half        # 2 batch blocks -> both TensorCores busy on v7x
    return Bp


# ------------------------------------------- Kernel 1: fused MLP + input projection
def _proj_kernel_extra(obs_ref, ext_ref, wm_ref, bm_ref, wim_ref, wie_ref, b_ref, gx_ref):
    # obs: (R, flat)  ext: (R, E)  -> gates_x: (R, 4H)   (lane-dense)
    h = jnp.dot(obs_ref[...], wm_ref[...], preferred_element_type=jnp.float32) + bm_ref[...]
    h = jnp.maximum(h, 0.0)
    g = jnp.dot(h.astype(wim_ref.dtype), wim_ref[...], preferred_element_type=jnp.float32)
    g = g + jnp.dot(ext_ref[...], wie_ref[...], preferred_element_type=jnp.float32)
    gx_ref[...] = (g + b_ref[...]).astype(gx_ref.dtype)


def _proj_kernel_plain(obs_ref, wm_ref, bm_ref, wim_ref, b_ref, gx_ref):
    h = jnp.dot(obs_ref[...], wm_ref[...], preferred_element_type=jnp.float32) + bm_ref[...]
    h = jnp.maximum(h, 0.0)
    g = jnp.dot(h.astype(wim_ref.dtype), wim_ref[...], preferred_element_type=jnp.float32)
    gx_ref[...] = (g + b_ref[...]).astype(gx_ref.dtype)


def run_input_projection(obs2d, ext2d, mlp_w, mlp_b, wih_mlp, wih_ext, bias, *,
                         row_tile, gates_dtype=jnp.float32):
    TB, flat = obs2d.shape
    fc = mlp_w.shape[1]
    G = wih_mlp.shape[1]                      # 4 * H
    tr = row_tile
    assert TB % tr == 0
    grid = (TB // tr,)
    bm = mlp_b.reshape(1, fc).astype(jnp.float32)
    bl = bias.reshape(1, G).astype(jnp.float32)
    cparams = pltpu.CompilerParams(dimension_semantics=("parallel",),
                                   vmem_limit_bytes=_VMEM_LIMIT)

    if ext2d is not None:
        E = ext2d.shape[1]
        return pl.pallas_call(
            _proj_kernel_extra,
            out_shape=jax.ShapeDtypeStruct((TB, G), gates_dtype),
            grid=grid,
            in_specs=[
                pl.BlockSpec((tr, flat), lambda i: (i, 0)),
                pl.BlockSpec((tr, E), lambda i: (i, 0)),
                pl.BlockSpec((flat, fc), lambda i: (0, 0)),
                pl.BlockSpec((1, fc), lambda i: (0, 0)),
                pl.BlockSpec((fc, G), lambda i: (0, 0)),
                pl.BlockSpec((E, G), lambda i: (0, 0)),
                pl.BlockSpec((1, G), lambda i: (0, 0)),
            ],
            out_specs=pl.BlockSpec((tr, G), lambda i: (i, 0)),
            compiler_params=cparams,
        )(obs2d, ext2d, mlp_w, bm, wih_mlp, wih_ext, bl)

    return pl.pallas_call(
        _proj_kernel_plain,
        out_shape=jax.ShapeDtypeStruct((TB, G), gates_dtype),
        grid=grid,
        in_specs=[
            pl.BlockSpec((tr, flat), lambda i: (i, 0)),
            pl.BlockSpec((flat, fc), lambda i: (0, 0)),
            pl.BlockSpec((1, fc), lambda i: (0, 0)),
            pl.BlockSpec((fc, G), lambda i: (0, 0)),
            pl.BlockSpec((1, G), lambda i: (0, 0)),
        ],
        out_specs=pl.BlockSpec((tr, G), lambda i: (i, 0)),
        compiler_params=cparams,
    )(obs2d, mlp_w, bm, wih_mlp, bl)


# --------------------------------------------------- Kernel 2: chunked LSTM recurrence
def run_lstm(gates_x, w_hh_t, h0, c0, *, seq_len, time_chunk, batch_tile, unroll=None):
    # gates_x: (Tp, Bp, 4H),  w_hh_t: (H, 4H),  h0/c0: (Bp, H) f32
    Tp, Bp, G = gates_x.shape
    H = w_hh_t.shape[0]
    Tc, Bt = time_chunk, batch_tile
    assert Tp % Tc == 0 and Bp % Bt == 0
    nb, nc = Bp // Bt, Tp // Tc
    unroll_n = unroll if unroll is not None else max(1, min(Tc, 8))
    mask_tail = (Tp != seq_len)

    def kernel(gx_ref, whh_ref, h0_ref, c0_ref, y_ref, hn_ref, cn_ref):
        c_idx = pl.program_id(1)   # time-chunk index (inner, "arbitrary")

        # State is carried directly in the hn/cn output blocks (constant index along
        # the time axis -> VMEM-resident across chunks).  Initialize at the first chunk
        # of every batch block.
        @pl.when(c_idx == 0)
        def _():
            hn_ref[...] = h0_ref[...]
            cn_ref[...] = c0_ref[...]

        whh = whh_ref[...]   # resident in VMEM (constant index_map)

        # Fused gate nonlinearity: ONE sigmoid over the full (Bt, 4H) gate tensor.
        # PyTorch gate order (i, f, g, o); g gate uses tanh(x) = 2*sigmoid(2x) - 1.
        col = lax.broadcasted_iota(jnp.int32, (1, G), 1)
        is_g = jnp.logical_and(col >= 2 * H, col < 3 * H)
        g_scale = jnp.where(is_g, 2.0, 1.0).astype(jnp.float32)
        g_shift = jnp.where(is_g, -1.0, 0.0).astype(jnp.float32)

        t_base = c_idx * Tc

        def step(t, carry):
            h, c = carry
            # gates_x already contains x @ W_ih + b_ih + b_hh
            gates = gx_ref[t].astype(jnp.float32) + jnp.dot(
                h.astype(whh.dtype), whh, preferred_element_type=jnp.float32)
            s = jax.nn.sigmoid(gates * g_scale) * g_scale + g_shift
            i_g = s[:, 0 * H:1 * H]
            f_g = s[:, 1 * H:2 * H]
            g_g = s[:, 2 * H:3 * H]
            o_g = s[:, 3 * H:4 * H]
            c_new = f_g * c + i_g * g_g
            h_new = o_g * jnp.tanh(c_new)
            if mask_tail:   # Python-static: only emitted when T was padded
                valid = (t_base + t) < seq_len
                c_new = jnp.where(valid, c_new, c)
                h_new = jnp.where(valid, h_new, h)
            y_ref[t] = h_new.astype(y_ref.dtype)
            return h_new, c_new

        h_fin, c_fin = lax.fori_loop(0, Tc, step, (hn_ref[...], cn_ref[...]),
                                     unroll=unroll_n)
        hn_ref[...] = h_fin
        cn_ref[...] = c_fin

    return pl.pallas_call(
        kernel,
        out_shape=(
            jax.ShapeDtypeStruct((Tp, Bp, H), jnp.float32),
            jax.ShapeDtypeStruct((Bp, H), jnp.float32),
            jax.ShapeDtypeStruct((Bp, H), jnp.float32),
        ),
        grid=(nb, nc),
        in_specs=[
            pl.BlockSpec((Tc, Bt, G), lambda b, c: (c, b, 0)),
            pl.BlockSpec((H, G), lambda b, c: (0, 0)),
            pl.BlockSpec((Bt, H), lambda b, c: (b, 0)),
            pl.BlockSpec((Bt, H), lambda b, c: (b, 0)),
        ],
        out_specs=(
            pl.BlockSpec((Tc, Bt, H), lambda b, c: (c, b, 0)),
            pl.BlockSpec((Bt, H), lambda b, c: (b, 0)),
            pl.BlockSpec((Bt, H), lambda b, c: (b, 0)),
        ),
        compiler_params=pltpu.CompilerParams(
            # batch blocks independent -> megacore on v7x; time chunks sequential.
            dimension_semantics=("parallel", "arbitrary"),
            vmem_limit_bytes=_VMEM_LIMIT,
        ),
    )(gates_x, w_hh_t, h0, c0)


# ----------------------------------------------------------------- module glue
def observation_lstm_forward(obs_emb, init_lstm_inputs, params, *,
                             init_rnn_state=None,
                             matmul_dtype=jnp.float32,
                             gates_dtype=jnp.float32,
                             time_chunk=None, row_tile=None,
                             batch_tile=None, unroll=None):
    """obs_emb: (T, B, *conv_feature_dims); init_lstm_inputs: list of (T, B, d) arrays."""
    T, B = obs_emb.shape[:2]
    flat = int(np.prod(obs_emb.shape[2:]))
    H = params["w_hh_t"].shape[0]
    G = 4 * H
    fc = params["mlp_w"].shape[1]

    extras = [e.reshape(T, B, -1) for e in init_lstm_inputs]
    E = sum(int(e.shape[-1]) for e in extras) if extras else 0

    # bf16 operands pack two rows per sublane -> pad batch to 16; else 8.
    use_bf16 = (jnp.dtype(matmul_dtype) == jnp.dtype(jnp.bfloat16)
                or jnp.dtype(gates_dtype) == jnp.dtype(jnp.bfloat16))
    pad_mult = 16 if use_bf16 else 8
    Bp = _round_up(max(B, pad_mult), pad_mult)
    Bt = _pick_batch_tile(Bp, pad_mult, batch_tile)

    gates_bytes = jnp.dtype(gates_dtype).itemsize
    in_bytes = jnp.dtype(matmul_dtype).itemsize

    Tc = time_chunk if time_chunk is not None else _pick_time_chunk(T, Bt, H, gates_bytes)
    Tc = max(1, min(Tc, T))
    Tp = _round_up(T, Tc)          # ragged T -> pad + in-kernel tail mask

    # --- pad obs / extras (time -> Tp, batch -> Bp) and flatten to rows ---
    obs = obs_emb.reshape(T, B, flat)
    obs = jnp.pad(obs, ((0, Tp - T), (0, Bp - B), (0, 0)))
    rows = Tp * Bp
    tr = row_tile if row_tile is not None else _pick_row_tile(
        rows, flat, E, G, in_bytes, gates_bytes, fc)
    RowsP = _round_up(rows, tr)    # pad rows to the tile instead of shrinking the tile

    obs2d = obs.reshape(rows, flat)
    if RowsP != rows:
        obs2d = jnp.pad(obs2d, ((0, RowsP - rows), (0, 0)))
    obs2d = obs2d.astype(matmul_dtype)

    # W_ih rows: extras first (matches torch.cat([init_lstm_inputs..., mlp_out], dim=2)).
    w_ih_t = params["w_ih_t"]
    wih_ext = w_ih_t[:E].astype(matmul_dtype) if E > 0 else None
    wih_mlp = w_ih_t[E:].astype(matmul_dtype)

    if E > 0:
        ext = jnp.concatenate(extras, axis=-1)
        ext = jnp.pad(ext, ((0, Tp - T), (0, Bp - B), (0, 0)))
        ext2d = ext.reshape(rows, E)
        if RowsP != rows:
            ext2d = jnp.pad(ext2d, ((0, RowsP - rows), (0, 0)))
        ext2d = ext2d.astype(matmul_dtype)
    else:
        ext2d = None

    gates = run_input_projection(
        obs2d, ext2d,
        params["mlp_w"].astype(matmul_dtype), params["mlp_b"],
        wih_mlp, wih_ext, params["bias"],
        row_tile=tr, gates_dtype=gates_dtype,
    )
    gates = gates[:rows].reshape(Tp, Bp, G)

    # --- initial state (PyTorch default is zeros when init_rnn_state is None) ---
    if init_rnn_state is None:
        h0 = jnp.zeros((Bp, H), jnp.float32)
        c0 = jnp.zeros((Bp, H), jnp.float32)
    else:
        h0_in, c0_in = init_rnn_state
        h0 = jnp.asarray(h0_in, jnp.float32).reshape(-1, H)[:B]
        c0 = jnp.asarray(c0_in, jnp.float32).reshape(-1, H)[:B]
        h0 = jnp.pad(h0, ((0, Bp - B), (0, 0)))
        c0 = jnp.pad(c0, ((0, Bp - B), (0, 0)))

    y, hn, cn = run_lstm(gates, params["w_hh_t"].astype(matmul_dtype), h0, c0,
                         seq_len=T, time_chunk=Tc, batch_tile=Bt, unroll=unroll)
    # Padded batch rows carry garbage state; slice them off before returning.
    return y[:T, :B, :], (hn[None, :B, :], cn[None, :B, :])


# ----------------------------------------------------------------- pure-JAX reference
def reference_forward(obs_emb, init_lstm_inputs, params, init_rnn_state=None):
    T, B = obs_emb.shape[:2]
    x2d = obs_emb.reshape(T, B, -1)
    mlp_out = jnp.maximum(x2d @ params["mlp_w"] + params["mlp_b"], 0.0)
    pieces = [e.reshape(T, B, -1) for e in init_lstm_inputs] + [mlp_out]
    lstm_in = jnp.concatenate(pieces, axis=2)
    H = params["w_hh_t"].shape[0]

    if init_rnn_state is None:
        h0 = jnp.zeros((B, H), jnp.float32)
        c0 = jnp.zeros((B, H), jnp.float32)
    else:
        h0 = jnp.asarray(init_rnn_state[0], jnp.float32).reshape(B, H)
        c0 = jnp.asarray(init_rnn_state[1], jnp.float32).reshape(B, H)

    def step(carry, x_t):
        h, c = carry
        gates = x_t @ params["w_ih_t"] + h @ params["w_hh_t"] + params["bias"]
        i = jax.nn.sigmoid(gates[:, 0 * H:1 * H])
        f = jax.nn.sigmoid(gates[:, 1 * H:2 * H])
        g = jnp.tanh(gates[:, 2 * H:3 * H])
        o = jax.nn.sigmoid(gates[:, 3 * H:4 * H])
        c = f * c + i * g
        h = o * jnp.tanh(c)
        return (h, c), h

    (hn, cn), ys = lax.scan(step, (h0, c0), lstm_in)
    return ys, (hn[None], cn[None])


if __name__ == "__main__":
    # Small deterministic config.
    T, B = 8, 2
    conv_feature_dims = (4, 4, 4)          # flat_dims = 64
    fc_size = 32
    lstm_size = 32
    extra_input_dim = 8
    flat_dims = int(np.prod(conv_feature_dims))
    input_size = fc_size + extra_input_dim

    key = jax.random.PRNGKey(0)
    ks = jax.random.split(key, 12)
    s_mlp = 1.0 / np.sqrt(flat_dims)
    s_lstm = 1.0 / np.sqrt(lstm_size)

    params = {
        "mlp_w": jax.random.uniform(ks[0], (flat_dims, fc_size), jnp.float32, -s_mlp, s_mlp),
        "mlp_b": jax.random.uniform(ks[1], (fc_size,), jnp.float32, -s_mlp, s_mlp),
        # W_ih (4H, I) / W_hh (4H, H) stored pre-transposed; bias = b_ih + b_hh.
        "w_ih_t": jax.random.uniform(ks[2], (input_size, 4 * lstm_size), jnp.float32, -s_lstm, s_lstm),
        "w_hh_t": jax.random.uniform(ks[3], (lstm_size, 4 * lstm_size), jnp.float32, -s_lstm, s_lstm),
        "bias": (jax.random.uniform(ks[4], (4 * lstm_size,), jnp.float32, -s_lstm, s_lstm)
                 + jax.random.uniform(ks[5], (4 * lstm_size,), jnp.float32, -s_lstm, s_lstm)),
    }

    obs_emb = jax.random.normal(ks[6], (T, B) + conv_feature_dims, jnp.float32)
    extra = jax.random.normal(ks[7], (T, B, extra_input_dim), jnp.float32)

    # 1) f32 path, default (budget-derived) tiling, zero init state.
    y_ref, (hn_ref, cn_ref) = reference_forward(obs_emb, [extra], params)
    y, (hn, cn) = observation_lstm_forward(obs_emb, [extra], params)
    jax.block_until_ready((y, hn, cn))
    np.testing.assert_allclose(np.asarray(y), np.asarray(y_ref), rtol=1e-4, atol=1e-4)
    np.testing.assert_allclose(np.asarray(hn), np.asarray(hn_ref), rtol=1e-4, atol=1e-4)
    np.testing.assert_allclose(np.asarray(cn), np.asarray(cn_ref), rtol=1e-4, atol=1e-4)
    assert y.shape == (T, B, lstm_size)
    assert hn.shape == (1, B, lstm_size) and cn.shape == (1, B, lstm_size)

    # 2) f32, ragged time chunk (Tc=3 -> padded Tp=9, masked tail) + nonzero init state.
    h0 = 0.1 * jax.random.normal(ks[8], (1, B, lstm_size), jnp.float32)
    c0 = 0.1 * jax.random.normal(ks[9], (1, B, lstm_size), jnp.float32)
    y2_ref, (hn2_ref, cn2_ref) = reference_forward(obs_emb, [extra], params, (h0, c0))
    y2, (hn2, cn2) = observation_lstm_forward(
        obs_emb, [extra], params, init_rnn_state=(h0, c0), time_chunk=3)
    jax.block_until_ready((y2, hn2, cn2))
    np.testing.assert_allclose(np.asarray(y2), np.asarray(y2_ref), rtol=1e-4, atol=1e-4)
    np.testing.assert_allclose(np.asarray(hn2), np.asarray(hn2_ref), rtol=1e-4, atol=1e-4)
    np.testing.assert_allclose(np.asarray(cn2), np.asarray(cn2_ref), rtol=1e-4, atol=1e-4)

    # 3) Larger batch -> exercises the batch-parallel recurrence grid (2 batch blocks)
    #    plus cross-chunk state carry (time_chunk=4 -> 2 chunks).
    B2 = 16
    obs_emb2 = jax.random.normal(ks[10], (T, B2) + conv_feature_dims, jnp.float32)
    extra2 = jax.random.normal(ks[11], (T, B2, extra_input_dim), jnp.float32)
    y3_ref, (hn3_ref, cn3_ref) = reference_forward(obs_emb2, [extra2], params)
    y3, (hn3, cn3) = observation_lstm_forward(obs_emb2, [extra2], params, time_chunk=4)
    jax.block_until_ready((y3, hn3, cn3))
    np.testing.assert_allclose(np.asarray(y3), np.asarray(y3_ref), rtol=1e-4, atol=1e-4)
    np.testing.assert_allclose(np.asarray(hn3), np.asarray(hn3_ref), rtol=1e-4, atol=1e-4)
    np.testing.assert_allclose(np.asarray(cn3), np.asarray(cn3_ref), rtol=1e-4, atol=1e-4)

    # 4) bf16 fast path: bf16 MXU operands + bf16 gates_x HBM handoff (valid on v5e too;
    #    state & gate math stay f32) -> loose tolerance from input/handoff rounding.
    y_bf, (hn_bf, cn_bf) = observation_lstm_forward(
        obs_emb, [extra], params, matmul_dtype=jnp.bfloat16, gates_dtype=jnp.bfloat16)
    jax.block_until_ready((y_bf, hn_bf, cn_bf))
    np.testing.assert_allclose(np.asarray(y_bf), np.asarray(y_ref), rtol=1e-1, atol=1e-1)
    np.testing.assert_allclose(np.asarray(cn_bf), np.asarray(cn_ref), rtol=1e-1, atol=1e-1)

    print("KERNEL_OK")
</pallas_src>

<mosaic_0001>
module attributes {stable_mosaic.version = 11 : i64} {
  func.func @_proj_kernel_extra(%arg0: i32, %arg1: memref<64x64xf32, #tpu.memory_space<vmem>>, %arg2: memref<64x8xf32, #tpu.memory_space<vmem>>, %arg3: memref<64x32xf32, #tpu.memory_space<vmem>>, %arg4: memref<1x32xf32, #tpu.memory_space<vmem>>, %arg5: memref<32x128xf32, #tpu.memory_space<vmem>>, %arg6: memref<8x128xf32, #tpu.memory_space<vmem>>, %arg7: memref<1x128xf32, #tpu.memory_space<vmem>>, %arg8: memref<64x128xf32, #tpu.memory_space<vmem>>) attributes {dimension_semantics = [#tpu.dimension_semantics<parallel>], iteration_bounds = array<i64: 1>, scalar_prefetch = 0 : i64, scratch_operands = 0 : i64, tpu.core_type = #tpu.core_type<tc>, window_params = [{transform_indices = @transform_0, window_bounds = array<i64: 64, 64>}, {transform_indices = @transform_1, window_bounds = array<i64: 64, 8>}, {pipeline_mode = #tpu.pipeline_mode<synchronous>, transform_indices = @transform_2, window_bounds = array<i64: 64, 32>}, {pipeline_mode = #tpu.pipeline_mode<synchronous>, transform_indices = @transform_3, window_bounds = array<i64: 1, 32>}, {pipeline_mode = #tpu.pipeline_mode<synchronous>, transform_indices = @transform_4, window_bounds = array<i64: 32, 128>}, {pipeline_mode = #tpu.pipeline_mode<synchronous>, transform_indices = @transform_5, window_bounds = array<i64: 8, 128>}, {pipeline_mode = #tpu.pipeline_mode<synchronous>, transform_indices = @transform_6, window_bounds = array<i64: 1, 128>}, {transform_indices = @transform_7, window_bounds = array<i64: 64, 128>}]} {
    %c0 = arith.constant 0 : index
    %c0_0 = arith.constant 0 : index
    %0 = vector.load %arg1[%c0, %c0_0] : memref<64x64xf32, #tpu.memory_space<vmem>>, vector<64x64xf32>
    %c0_1 = arith.constant 0 : index
    %c0_2 = arith.constant 0 : index
    %1 = vector.load %arg3[%c0_1, %c0_2] : memref<64x32xf32, #tpu.memory_space<vmem>>, vector<64x32xf32>
    %cst = arith.constant dense<0.000000e+00> : vector<64x32xf32>
    %2 = tpu.matmul %0, %1, %cst {dimension_numbers = #tpu.dot_dimension_numbers<[1], [0], [0], [1], [0, 0, 1, 1], [], []>} : vector<64x64xf32>, vector<64x32xf32>, vector<64x32xf32> -> vector<64x32xf32>
    %c0_3 = arith.constant 0 : index
    %c0_4 = arith.constant 0 : index
    %3 = vector.load %arg4[%c0_3, %c0_4] : memref<1x32xf32, #tpu.memory_space<vmem>>, vector<1x32xf32>
    %4 = vector.broadcast %3 : vector<1x32xf32> to vector<64x32xf32>
    %5 = arith.addf %2, %4 : vector<64x32xf32>
    %cst_5 = arith.constant 0.000000e+00 : f32
    %6 = vector.broadcast %cst_5 : f32 to vector<64x32xf32>
    %7 = arith.maximumf %5, %6 : vector<64x32xf32>
    %c0_6 = arith.constant 0 : index
    %c0_7 = arith.constant 0 : index
    %8 = vector.load %arg5[%c0_6, %c0_7] : memref<32x128xf32, #tpu.memory_space<vmem>>, vector<32x128xf32>
    %cst_8 = arith.constant dense<0.000000e+00> : vector<64x128xf32>
    %9 = tpu.matmul %7, %8, %cst_8 {dimension_numbers = #tpu.dot_dimension_numbers<[1], [0], [0], [1], [0, 0, 1, 1], [], []>} : vector<64x32xf32>, vector<32x128xf32>, vector<64x128xf32> -> vector<64x128xf32>
    %c0_9 = arith.constant 0 : index
    %c0_10 = arith.constant 0 : index
    %10 = vector.load %arg2[%c0_9, %c0_10] : memref<64x8xf32, #tpu.memory_space<vmem>>, vector<64x8xf32>
    %c0_11 = arith.constant 0 : index
    %c0_12 = arith.constant 0 : index
    %11 = vector.load %arg6[%c0_11, %c0_12] : memref<8x128xf32, #tpu.memory_space<vmem>>, vector<8x128xf32>
    %cst_13 = arith.constant dense<0.000000e+00> : vector<64x128xf32>
    %12 = tpu.matmul %10, %11, %cst_13 {dimension_numbers = #tpu.dot_dimension_numbers<[1], [0], [0], [1], [0, 0, 1, 1], [], []>} : vector<64x8xf32>, vector<8x128xf32>, vector<64x128xf32> -> vector<64x128xf32>
    %13 = arith.addf %9, %12 : vector<64x128xf32>
    %c0_14 = arith.constant 0 : index
    %c0_15 = arith.constant 0 : index
    %14 = vector.load %arg7[%c0_14, %c0_15] : memref<1x128xf32, #tpu.memory_space<vmem>>, vector<1x128xf32>
    %15 = vector.broadcast %14 : vector<1x128xf32> to vector<64x128xf32>
    %16 = arith.addf %13, %15 : vector<64x128xf32>
    %c0_16 = arith.constant 0 : index
    %c0_17 = arith.constant 0 : index
    %17 = vector.load %arg8[%c0_16, %c0_17] : memref<64x128xf32, #tpu.memory_space<vmem>>, vector<64x128xf32>
    tpu.vector_store %arg8[%c0_16, %c0_17], %16 {strides = array<i32>} : memref<64x128xf32, #tpu.memory_space<vmem>>, vector<64x128xf32>,
    return
  }
  func.func @transform_0(%arg0: i32) -> (i32, i32) {
    %c0_i32 = arith.constant 0 : i32
    %c0_i32_0 = arith.constant 0 : i32
    return %arg0, %c0_i32 : i32, i32
  }
  func.func @transform_1(%arg0: i32) -> (i32, i32) {
    %c0_i32 = arith.constant 0 : i32
    %c0_i32_0 = arith.constant 0 : i32
    return %arg0, %c0_i32 : i32, i32
  }
  func.func @transform_2(%arg0: i32) -> (i32, i32) {
    %c0_i32 = arith.constant 0 : i32
    %c0_i32_0 = arith.constant 0 : i32
    %c0_i32_1 = arith.constant 0 : i32
    return %c0_i32, %c0_i32_0 : i32, i32
  }
  func.func @transform_3(%arg0: i32) -> (i32, i32) {
    %c0_i32 = arith.constant 0 : i32
    %c0_i32_0 = arith.constant 0 : i32
    %c0_i32_1 = arith.constant 0 : i32
    return %c0_i32, %c0_i32_0 : i32, i32
  }
  func.func @transform_4(%arg0: i32) -> (i32, i32) {
    %c0_i32 = arith.constant 0 : i32
    %c0_i32_0 = arith.constant 0 : i32
    %c0_i32_1 = arith.constant 0 : i32
    return %c0_i32, %c0_i32_0 : i32, i32
  }
  func.func @transform_5(%arg0: i32) -> (i32, i32) {
    %c0_i32 = arith.constant 0 : i32
    %c0_i32_0 = arith.constant 0 : i32
    %c0_i32_1 = arith.constant 0 : i32
    return %c0_i32, %c0_i32_0 : i32, i32
  }
  func.func @transform_6(%arg0: i32) -> (i32, i32) {
    %c0_i32 = arith.constant 0 : i32
    %c0_i32_0 = arith.constant 0 : i32
    %c0_i32_1 = arith.constant 0 : i32
    return %c0_i32, %c0_i32_0 : i32, i32
  }
  func.func @transform_7(%arg0: i32) -> (i32, i32) {
    %c0_i32 = arith.constant 0 : i32
    %c0_i32_0 = arith.constant 0 : i32
    return %arg0, %c0_i32 : i32, i32
  }
}

</mosaic_0001>

<llo_original>
// kernel: tpu_custom_call.1
$region0: #{tpu_custom_call.1}
  #allocation0 [shape = 'u32[]', space=smem, size = 0x4, offset = 0x4, fixed_abs, tag = 'smem constant byte address 0x4 - core index']
  #allocation1 [shape = 'u32[144,128]{1,0:T(1,128)}', space=vmem, size = 0x12000, scoped, tag = 'internal scratch']
  %s0 = inlined_call_operand.vmem [shape: f32[64,64], index: 0, kind: input, shape index: {}]
  %s1 = inlined_call_operand.vmem [shape: f32[64,8], index: 1, kind: input, shape index: {}]
  %s2 = inlined_call_operand.vmem [shape: f32[64,32], index: 2, kind: input, shape index: {}]
  %s3 = inlined_call_operand.vmem [shape: f32[1,32], index: 3, kind: input, shape index: {}]
  %s4 = inlined_call_operand.vmem [shape: f32[32,128], index: 4, kind: input, shape index: {}]
  %s5 = inlined_call_operand.vmem [shape: f32[8,128], index: 5, kind: input, shape index: {}]
  %s6 = inlined_call_operand.vmem [shape: f32[1,128], index: 6, kind: input, shape index: {}]
  %s7 = inlined_call_operand.hbm [shape: f32[64,128], index: 7, kind: output, shape index: {}]
  %s8 = sld [smem:[#allocation0]]
  $region38: #{tpu_custom_call.1} parent=0
    _
  %s10 = ssub.s32 1, %s8
  %s11 = scalar_select 0, %s10, %s8
  $region1: #{tpu_custom_call.1} parent=0
    #allocation2 [shape = 'u8[32768]{0}', space=vmem, size = 0x8000, scoped, tag = 'output window, operand 0, single buffered']
    #allocation3 [shape = 's32[1]{0}', space=sflag, size = 0x4, scoped, tag = 'scoped memory for tpu_custom_call.1']
    %12 = vsyncpa [#allocation3], 0
    // Predicated region
    $region2: #{tpu_custom_call.1} parent=1 // pred_check
      _
    $region3: #{tpu_custom_call.1} parent=1 // pred_check_branch
      %14 = sbr.rel (0) target = $region5
    $region4: #{tpu_custom_call.1} parent=1 // pred_region
      _
    $region5: #{tpu_custom_call.1} parent=1 // pred_fallthru
      _
    // Predicated region
    $region6: #{tpu_custom_call.1} parent=1 // pred_check
      _
    $region7: #{tpu_custom_call.1} parent=1 // pred_check_branch
      %16 = sbr.rel (0) target = $region9
    $region8: #{tpu_custom_call.1} parent=1 // pred_region
      _
    $region9: #{tpu_custom_call.1} parent=1 // pred_fallthru
      _
    // Predicated region
    $region10: #{tpu_custom_call.1} parent=1 // pred_check
      _
    $region11: #{tpu_custom_call.1} parent=1 // pred_check_branch
      %18 = sbr.rel (0) target = $region13
    $region12: #{tpu_custom_call.1} parent=1 // pred_region
      _
    $region13: #{tpu_custom_call.1} parent=1 // pred_fallthru
      _
    // Predicated region
    $region14: #{tpu_custom_call.1} parent=1 // pred_check
      _
    $region15: #{tpu_custom_call.1} parent=1 // pred_check_branch
      %20 = sbr.rel (0) target = $region17
    $region16: #{tpu_custom_call.1} parent=1 // pred_region
      _
    $region17: #{tpu_custom_call.1} parent=1 // pred_fallthru
      _
    // Predicated region
    $region18: #{tpu_custom_call.1} parent=1 // pred_check
      _
    $region19: #{tpu_custom_call.1} parent=1 // pred_check_branch
      %22 = sbr.rel (0) target = $region21
    $region20: #{tpu_custom_call.1} parent=1 // pred_region
      _
    $region21: #{tpu_custom_call.1} parent=1 // pred_fallthru
      _
    // Predicated region
    $region22: #{tpu_custom_call.1} parent=1 // pred_check
      _
    $region23: #{tpu_custom_call.1} parent=1 // pred_check_branch
      %24 = sbr.rel (0) target = $region25
    $region24: #{tpu_custom_call.1} parent=1 // pred_region
      _
    $region25: #{tpu_custom_call.1} parent=1 // pred_fallthru
      _
    // Predicated region
    $region26: #{tpu_custom_call.1} parent=1 // pred_check
      _
    $region27: #{tpu_custom_call.1} parent=1 // pred_check_branch
      %26 = sbr.rel (0) target = $region29
    $region28: #{tpu_custom_call.1} parent=1 // pred_region
      _
    $region29: #{tpu_custom_call.1} parent=1 // pred_fallthru
      _
    %v27 = vld [vmem:[%s0] sm:$0xff]
    %v28 = vld [vmem:[%s0 + $0x8] sm:$0xff]
    %v29 = vld [vmem:[%s0 + $0x10] sm:$0xff]
    %v30 = vld [vmem:[%s0 + $0x18] sm:$0xff]
    %v31 = vld [vmem:[%s0 + $0x20] sm:$0xff]
    %v32 = vld [vmem:[%s0 + $0x28] sm:$0xff]
    %v33 = vld [vmem:[%s0 + $0x30] sm:$0xff]
    %v34 = vld [vmem:[%s0 + $0x38] sm:$0xff]
    %v35 = vld [vmem:[%s2] sm:$0xff]
    %v36 = vld [vmem:[%s2 + $0x8] sm:$0xff]
    %v37 = vld [vmem:[%s2 + $0x10] sm:$0xff]
    %v38 = vld [vmem:[%s2 + $0x18] sm:$0xff]
    %v39 = vld [vmem:[%s2 + $0x20] sm:$0xff]
    %v40 = vld [vmem:[%s2 + $0x28] sm:$0xff]
    %v41 = vld [vmem:[%s2 + $0x30] sm:$0xff]
    %v42 = vld [vmem:[%s2 + $0x38] sm:$0xff]
    %v43 = vld [vmem:[%s3] sm:$0x1]
    %v45 = vlaneseq
    %v46 = vshrl.u32 %v45, 7
    %v47 = vsub.s32 0, %v46
    %v48 = vrot.slane %v43, %v47
    %vm50 = vcmask 523264
    %v52 = vsel %vm50, %v27, 0
    %v55 = vsel %vm50, %v28, 0
    %v58 = vsel %vm50, %v29, 0
    %v61 = vsel %vm50, %v30, 0
    %v64 = vsel %vm50, %v31, 0
    %v67 = vsel %vm50, %v32, 0
    %v70 = vsel %vm50, %v33, 0
    %v73 = vsel %vm50, %v34, 0
    %75 = vmatprep.subr.mxu0 0.0
    %76 = vmatpush1.msra.mxu0 0.0
    %77 = vmatprep.subr.mxu0 0.0
    %78 = vmatpush1.msra.mxu0 0.0
    %79 = vmatprep.subr.mxu0 0.0
    %80 = vmatpush1.msra.mxu0 0.0
    %81 = vmatprep.subr.mxu0 0.0
    %82 = vmatpush1.msra.mxu0 0.0
    %83 = vmatprep.subr.mxu0 0.0
    %84 = vmatpush1.msra.mxu0 0.0
    %85 = vmatprep.subr.mxu0 0.0
    %86 = vmatpush1.msra.mxu0 0.0
    %87 = vmatprep.subr.mxu0 0.0
    %88 = vmatpush1.msra.mxu0 0.0
    %89 = vmatprep.subr.mxu0 0.0
    %90 = vmatpush1.msra.mxu0 0.0
    %91 = vmatprep.subr.mxu0 0.0
    %92 = vmatpush1.msra.mxu0 %v42
    %93 = vmatprep.subr.mxu0 0.0
    %94 = vmatpush1.msra.mxu0 %v41
    %95 = vmatprep.subr.mxu0 0.0
    %96 = vmatpush1.msra.mxu0 %v40
    %97 = vmatprep.subr.mxu0 0.0
    %98 = vmatpush1.msra.mxu0 %v39
    %99 = vmatprep.subr.mxu0 0.0
    %100 = vmatpush1.msra.mxu0 %v38
    %101 = vmatprep.subr.mxu0 0.0
    %102 = vmatpush1.msra.mxu0 %v37
    %103 = vmatprep.subr.mxu0 0.0
    %104 = vmatpush1.msra.mxu0 %v36
    %105 = vmatprep.subr.mxu0 0.0
    %106 = vmatpush1.msra.mxu0 %v35
    %107 = vmatprep.subr.mxu0 0.0
    %108 = vmatpush2.msra.mxu0 0.0
    %109 = vmatprep.subr.mxu0 0.0
    %110 = vmatpush2.msra.mxu0 0.0
    %111 = vmatprep.subr.mxu0 0.0
    %112 = vmatpush2.msra.mxu0 0.0
    %113 = vmatprep.subr.mxu0 0.0
    %114 = vmatpush2.msra.mxu0 0.0
    %115 = vmatprep.subr.mxu0 0.0
    %116 = vmatpush2.msra.mxu0 0.0
    %117 = vmatprep.subr.mxu0 0.0
    %118 = vmatpush2.msra.mxu0 0.0
    %119 = vmatprep.subr.mxu0 0.0
    %120 = vmatpush2.msra.mxu0 0.0
    %121 = vmatprep.subr.mxu0 0.0
    %122 = vmatpush2.msra.mxu0 0.0
    %123 = vmatprep.subr.mxu0 0.0
    %124 = vmatpush2.msra.mxu0 0.0
    %125 = vmatprep.subr.mxu0 0.0
    %126 = vmatpush2.msra.mxu0 0.0
    %127 = vmatprep.subr.mxu0 0.0
    %128 = vmatpush2.msra.mxu0 0.0
    %129 = vmatprep.subr.mxu0 0.0
    %130 = vmatpush2.msra.mxu0 0.0
    %131 = vmatprep.subr.mxu0 0.0
    %132 = vmatpush2.msra.mxu0 0.0
    %133 = vmatprep.subr.mxu0 0.0
    %134 = vmatpush2.msra.mxu0 0.0
    %135 = vmatprep.subr.mxu0 0.0
    %136 = vmatpush2.msra.mxu0 0.0
    %137 = vmatprep.subr.mxu0 0.0
    %138 = vmatpush2.msra.mxu0 0.0
    %139 = vmatprep.mubr.f32.mxu0 0.0
    %140 = vmatmul.mubr.f32.gmra.mxu0 %v52
    %v141 = vpop.f32.mrf.mxu0
    %v142 = vadd.f32 %v48, %v141
    %v143 = vpop.f32.mrf.mxu0
    %144 = vmatprep.mubr.f32.mxu0 0.0
    %145 = vmatmul.mubr.f32.gmra.mxu0 %v55
    %v146 = vpop.f32.mrf.mxu0
    %v147 = vadd.f32 %v48, %v146
    %v148 = vpop.f32.mrf.mxu0
    %149 = vmatprep.mubr.f32.mxu0 0.0
    %150 = vmatmul.mubr.f32.gmra.mxu0 %v58
    %v151 = vpop.f32.mrf.mxu0
    %v152 = vadd.f32 %v48, %v151
    %v153 = vpop.f32.mrf.mxu0
    %154 = vmatprep.mubr.f32.mxu0 0.0
    %155 = vmatmul.mubr.f32.gmra.mxu0 %v61
    %v156 = vpop.f32.mrf.mxu0
    %v157 = vadd.f32 %v48, %v156
    %v158 = vpop.f32.mrf.mxu0
    %159 = vmatprep.mubr.f32.mxu0 0.0
    %160 = vmatmul.mubr.f32.gmra.mxu0 %v64
    %v161 = vpop.f32.mrf.mxu0
    %v162 = vadd.f32 %v48, %v161
    %v163 = vpop.f32.mrf.mxu0
    %164 = vmatprep.mubr.f32.mxu0 0.0
    %165 = vmatmul.mubr.f32.gmra.mxu0 %v67
    %v166 = vpop.f32.mrf.mxu0
    %v167 = vadd.f32 %v48, %v166
    %v168 = vpop.f32.mrf.mxu0
    %169 = vmatprep.mubr.f32.mxu0 0.0
    %170 = vmatmul.mubr.f32.gmra.mxu0 %v70
    %v171 = vpop.f32.mrf.mxu0
    %v172 = vadd.f32 %v48, %v171
    %v173 = vpop.f32.mrf.mxu0
    %174 = vmatprep.mubr.f32.mxu0 0.0
    %175 = vmatmul.mubr.f32.gmra.mxu0 %v73
    %v176 = vpop.f32.mrf.mxu0
    %v177 = vadd.f32 %v48, %v176
    %v178 = vpop.f32.mrf.mxu0
    %179 = vdwg.mxu0
    %v180 = vmax.f32 %v142, 0.0
    %v181 = vmax.f32 %v147, 0.0
    %v182 = vmax.f32 %v152, 0.0
    %v183 = vmax.f32 %v157, 0.0
    %v184 = vmax.f32 %v162, 0.0
    %v185 = vmax.f32 %v167, 0.0
    %v186 = vmax.f32 %v172, 0.0
    %v187 = vmax.f32 %v177, 0.0
    %v188 = vld [vmem:[%s4] sm:$0xff]
    %v189 = vld [vmem:[%s4 + $0x8] sm:$0xff]
    %v190 = vld [vmem:[%s4 + $0x10] sm:$0xff]
    %v191 = vld [vmem:[%s4 + $0x18] sm:$0xff]
    %v192 = vld [vmem:[%s1] sm:$0xff]
    %v193 = vld [vmem:[%s1 + $0x8] sm:$0xff]
    %v194 = vld [vmem:[%s1 + $0x10] sm:$0xff]
    %v195 = vld [vmem:[%s1 + $0x18] sm:$0xff]
    %v196 = vld [vmem:[%s1 + $0x20] sm:$0xff]
    %v197 = vld [vmem:[%s1 + $0x28] sm:$0xff]
    %v198 = vld [vmem:[%s1 + $0x30] sm:$0xff]
    %v199 = vld [vmem:[%s1 + $0x38] sm:$0xff]
    %v200 = vld [vmem:[%s5] sm:$0xff]
    %vm201 = vcmask 64512
    %v203 = vsel %vm201, %v192, 0
    %v206 = vsel %vm201, %v193, 0
    %v209 = vsel %vm201, %v194, 0
    %v212 = vsel %vm201, %v195, 0
    %v215 = vsel %vm201, %v196, 0
    %v218 = vsel %vm201, %v197, 0
    %v221 = vsel %vm201, %v198, 0
    %v224 = vsel %vm201, %v199, 0
    %226 = vmatprep.subr.mxu0 0.0
    %227 = vmatpush1.msra.mxu0 0.0
    %228 = vmatprep.subr.mxu0 0.0
    %229 = vmatpush1.msra.mxu0 0.0
    %230 = vmatprep.subr.mxu0 0.0
    %231 = vmatpush1.msra.mxu0 0.0
    %232 = vmatprep.subr.mxu0 0.0
    %233 = vmatpush1.msra.mxu0 0.0
    %234 = vmatprep.subr.mxu0 0.0
    %235 = vmatpush1.msra.mxu0 0.0
    %236 = vmatprep.subr.mxu0 0.0
    %237 = vmatpush1.msra.mxu0 0.0
    %238 = vmatprep.subr.mxu0 0.0
    %239 = vmatpush1.msra.mxu0 0.0
    %240 = vmatprep.subr.mxu0 0.0
    %241 = vmatpush1.msra.mxu0 0.0
    %242 = vmatprep.subr.mxu0 0.0
    %243 = vmatpush1.msra.mxu0 0.0
    %244 = vmatprep.subr.mxu0 0.0
    %245 = vmatpush1.msra.mxu0 0.0
    %246 = vmatprep.subr.mxu0 0.0
    %247 = vmatpush1.msra.mxu0 0.0
    %248 = vmatprep.subr.mxu0 0.0
    %249 = vmatpush1.msra.mxu0 0.0
    %250 = vmatprep.subr.mxu0 0.0
    %251 = vmatpush1.msra.mxu0 0.0
    %252 = vmatprep.subr.mxu0 0.0
    %253 = vmatpush1.msra.mxu0 0.0
    %254 = vmatprep.subr.mxu0 0.0
    %255 = vmatpush1.msra.mxu0 0.0
    %256 = vmatprep.subr.mxu0 0.0
    %257 = vmatpush1.msra.mxu0 %v200
    %258 = vmatprep.subr.mxu0 0.0
    %259 = vmatpush2.msra.mxu0 0.0
    %260 = vmatprep.subr.mxu0 0.0
    %261 = vmatpush2.msra.mxu0 0.0
    %262 = vmatprep.subr.mxu0 0.0
    %263 = vmatpush2.msra.mxu0 0.0
    %264 = vmatprep.subr.mxu0 0.0
    %265 = vmatpush2.msra.mxu0 0.0
    %266 = vmatprep.subr.mxu0 0.0
    %267 = vmatpush2.msra.mxu0 0.0
    %268 = vmatprep.subr.mxu0 0.0
    %269 = vmatpush2.msra.mxu0 0.0
    %270 = vmatprep.subr.mxu0 0.0
    %271 = vmatpush2.msra.mxu0 0.0
    %272 = vmatprep.subr.mxu0 0.0
    %273 = vmatpush2.msra.mxu0 0.0
    %274 = vmatprep.subr.mxu0 0.0
    %275 = vmatpush2.msra.mxu0 0.0
    %276 = vmatprep.subr.mxu0 0.0
    %277 = vmatpush2.msra.mxu0 0.0
    %278 = vmatprep.subr.mxu0 0.0
    %279 = vmatpush2.msra.mxu0 0.0
    %280 = vmatprep.subr.mxu0 0.0
    %281 = vmatpush2.msra.mxu0 0.0
    %282 = vmatprep.subr.mxu0 0.0
    %283 = vmatpush2.msra.mxu0 0.0
    %284 = vmatprep.subr.mxu0 0.0
    %285 = vmatpush2.msra.mxu0 0.0
    %286 = vmatprep.subr.mxu0 0.0
    %287 = vmatpush2.msra.mxu0 0.0
    %288 = vmatprep.subr.mxu0 0.0
    %289 = vmatpush2.msra.mxu0 0.0
    %290 = vmatprep.mubr.f32.mxu0 0.0
    %291 = vmatmul.mubr.f32.gmra.mxu0 %v203
    %v292 = vpop.f32.mrf.mxu0
    %v293 = vadd.f32 0.0, %v292
    %v294 = vpop.f32.mrf.mxu0
    %295 = vmatprep.mubr.f32.mxu0 0.0
    %296 = vmatmul.mubr.f32.gmra.mxu0 %v206
    %v297 = vpop.f32.mrf.mxu0
    %v298 = vadd.f32 0.0, %v297
    %v299 = vpop.f32.mrf.mxu0
    %300 = vmatprep.mubr.f32.mxu0 0.0
    %301 = vmatmul.mubr.f32.gmra.mxu0 %v209
    %v302 = vpop.f32.mrf.mxu0
    %v303 = vadd.f32 0.0, %v302
    %v304 = vpop.f32.mrf.mxu0
    %305 = vmatprep.mubr.f32.mxu0 0.0
    %306 = vmatmul.mubr.f32.gmra.mxu0 %v212
    %v307 = vpop.f32.mrf.mxu0
    %v308 = vadd.f32 0.0, %v307
    %v309 = vpop.f32.mrf.mxu0
    %310 = vmatprep.mubr.f32.mxu0 0.0
    %311 = vmatmul.mubr.f32.gmra.mxu0 %v215
    %v312 = vpop.f32.mrf.mxu0
    %v313 = vadd.f32 0.0, %v312
    %v314 = vpop.f32.mrf.mxu0
    %315 = vmatprep.mubr.f32.mxu0 0.0
    %316 = vmatmul.mubr.f32.gmra.mxu0 %v218
    %v317 = vpop.f32.mrf.mxu0
    %v318 = vadd.f32 0.0, %v317
    %v319 = vpop.f32.mrf.mxu0
    %320 = vmatprep.mubr.f32.mxu0 0.0
    %321 = vmatmul.mubr.f32.gmra.mxu0 %v221
    %v322 = vpop.f32.mrf.mxu0
    %v323 = vadd.f32 0.0, %v322
    %v324 = vpop.f32.mrf.mxu0
    %325 = vmatprep.mubr.f32.mxu0 0.0
    %326 = vmatmul.mubr.f32.gmra.mxu0 %v224
    %v327 = vpop.f32.mrf.mxu0
    %v328 = vadd.f32 0.0, %v327
    %v329 = vpop.f32.mrf.mxu0
    %330 = vdwg.mxu0
    %vm331 = vcmask 261120
    %v333 = vsel %vm331, %v180, 0
    %v336 = vsel %vm331, %v181, 0
    %v339 = vsel %vm331, %v182, 0
    %v342 = vsel %vm331, %v183, 0
    %v345 = vsel %vm331, %v184, 0
    %v348 = vsel %vm331, %v185, 0
    %v351 = vsel %vm331, %v186, 0
    %v354 = vsel %vm331, %v187, 0
    %356 = vmatprep.subr.mxu0 0.0
    %357 = vmatpush1.msra.mxu0 0.0
    %358 = vmatprep.subr.mxu0 0.0
    %359 = vmatpush1.msra.mxu0 0.0
    %360 = vmatprep.subr.mxu0 0.0
    %361 = vmatpush1.msra.mxu0 0.0
    %362 = vmatprep.subr.mxu0 0.0
    %363 = vmatpush1.msra.mxu0 0.0
    %364 = vmatprep.subr.mxu0 0.0
    %365 = vmatpush1.msra.mxu0 0.0
    %366 = vmatprep.subr.mxu0 0.0
    %367 = vmatpush1.msra.mxu0 0.0
    %368 = vmatprep.subr.mxu0 0.0
    %369 = vmatpush1.msra.mxu0 0.0
    %370 = vmatprep.subr.mxu0 0.0
    %371 = vmatpush1.msra.mxu0 0.0
    %372 = vmatprep.subr.mxu0 0.0
    %373 = vmatpush1.msra.mxu0 0.0
    %374 = vmatprep.subr.mxu0 0.0
    %375 = vmatpush1.msra.mxu0 0.0
    %376 = vmatprep.subr.mxu0 0.0
    %377 = vmatpush1.msra.mxu0 0.0
    %378 = vmatprep.subr.mxu0 0.0
    %379 = vmatpush1.msra.mxu0 0.0
    %380 = vmatprep.subr.mxu0 0.0
    %381 = vmatpush1.msra.mxu0 %v191
    %382 = vmatprep.subr.mxu0 0.0
    %383 = vmatpush1.msra.mxu0 %v190
    %384 = vmatprep.subr.mxu0 0.0
    %385 = vmatpush1.msra.mxu0 %v189
    %386 = vmatprep.subr.mxu0 0.0
    %387 = vmatpush1.msra.mxu0 %v188
    %388 = vmatprep.subr.mxu0 0.0
    %389 = vmatpush2.msra.mxu0 0.0
    %390 = vmatprep.subr.mxu0 0.0
    %391 = vmatpush2.msra.mxu0 0.0
    %392 = vmatprep.subr.mxu0 0.0
    %393 = vmatpush2.msra.mxu0 0.0
    %394 = vmatprep.subr.mxu0 0.0
    %395 = vmatpush2.msra.mxu0 0.0
    %396 = vmatprep.subr.mxu0 0.0
    %397 = vmatpush2.msra.mxu0 0.0
    %398 = vmatprep.subr.mxu0 0.0
    %399 = vmatpush2.msra.mxu0 0.0
    %400 = vmatprep.subr.mxu0 0.0
    %401 = vmatpush2.msra.mxu0 0.0
    %402 = vmatprep.subr.mxu0 0.0
    %403 = vmatpush2.msra.mxu0 0.0
    %404 = vmatprep.subr.mxu0 0.0
    %405 = vmatpush2.msra.mxu0 0.0
    %406 = vmatprep.subr.mxu0 0.0
    %407 = vmatpush2.msra.mxu0 0.0
    %408 = vmatprep.subr.mxu0 0.0
    %409 = vmatpush2.msra.mxu0 0.0
    %410 = vmatprep.subr.mxu0 0.0
    %411 = vmatpush2.msra.mxu0 0.0
    %412 = vmatprep.subr.mxu0 0.0
    %413 = vmatpush2.msra.mxu0 0.0
    %414 = vmatprep.subr.mxu0 0.0
    %415 = vmatpush2.msra.mxu0 0.0
    %416 = vmatprep.subr.mxu0 0.0
    %417 = vmatpush2.msra.mxu0 0.0
    %418 = vmatprep.subr.mxu0 0.0
    %419 = vmatpush2.msra.mxu0 0.0
    %420 = vmatprep.mubr.f32.mxu0 0.0
    %421 = vmatmul.mubr.f32.gmra.mxu0 %v333
    %v422 = vpop.f32.mrf.mxu0
    %v423 = vadd.f32 %v293, %v422
    %v424 = vpop.f32.mrf.mxu0
    %425 = vmatprep.mubr.f32.mxu0 0.0
    %426 = vmatmul.mubr.f32.gmra.mxu0 %v336
    %v427 = vpop.f32.mrf.mxu0
    %v428 = vadd.f32 %v298, %v427
    %v429 = vpop.f32.mrf.mxu0
    %430 = vmatprep.mubr.f32.mxu0 0.0
    %431 = vmatmul.mubr.f32.gmra.mxu0 %v339
    %v432 = vpop.f32.mrf.mxu0
    %v433 = vadd.f32 %v303, %v432
    %v434 = vpop.f32.mrf.mxu0
    %435 = vmatprep.mubr.f32.mxu0 0.0
    %436 = vmatmul.mubr.f32.gmra.mxu0 %v342
    %v437 = vpop.f32.mrf.mxu0
    %v438 = vadd.f32 %v308, %v437
    %v439 = vpop.f32.mrf.mxu0
    %440 = vmatprep.mubr.f32.mxu0 0.0
    %441 = vmatmul.mubr.f32.gmra.mxu0 %v345
    %v442 = vpop.f32.mrf.mxu0
    %v443 = vadd.f32 %v313, %v442
    %v444 = vpop.f32.mrf.mxu0
    %445 = vmatprep.mubr.f32.mxu0 0.0
    %446 = vmatmul.mubr.f32.gmra.mxu0 %v348
    %v447 = vpop.f32.mrf.mxu0
    %v448 = vadd.f32 %v318, %v447
    %v449 = vpop.f32.mrf.mxu0
    %450 = vmatprep.mubr.f32.mxu0 0.0
    %451 = vmatmul.mubr.f32.gmra.mxu0 %v351
    %v452 = vpop.f32.mrf.mxu0
    %v453 = vadd.f32 %v323, %v452
    %v454 = vpop.f32.mrf.mxu0
    %455 = vmatprep.mubr.f32.mxu0 0.0
    %456 = vmatmul.mubr.f32.gmra.mxu0 %v354
    %v457 = vpop.f32.mrf.mxu0
    %v458 = vadd.f32 %v328, %v457
    %v459 = vpop.f32.mrf.mxu0
    %460 = vdwg.mxu0
    %v461 = vld [vmem:[%s6] sm:$0x1]
    %v463 = vlaneseq
    %v464 = vshrl.u32 %v463, 7
    %v465 = vsub.s32 0, %v464
    %v466 = vrot.slane %v461, %v465
    %v468 = vadd.f32 %v423, %v466
    %v469 = vadd.f32 %v428, %v466
    %v470 = vadd.f32 %v433, %v466
    %v471 = vadd.f32 %v438, %v466
    %v472 = vadd.f32 %v443, %v466
    %v473 = vadd.f32 %v448, %v466
    %v474 = vadd.f32 %v453, %v466
    %v475 = vadd.f32 %v458, %v466
    %476 = vst [vmem:[#allocation2] sm:$0xff] %v468
    %477 = vst [vmem:[#allocation2 + $0x8] sm:$0xff] %v469
    %478 = vst [vmem:[#allocation2 + $0x10] sm:$0xff] %v470
    %479 = vst [vmem:[#allocation2 + $0x18] sm:$0xff] %v471
    %480 = vst [vmem:[#allocation2 + $0x20] sm:$0xff] %v472
    %481 = vst [vmem:[#allocation2 + $0x28] sm:$0xff] %v473
    %482 = vst [vmem:[#allocation2 + $0x30] sm:$0xff] %v474
    %483 = vst [vmem:[#allocation2 + $0x38] sm:$0xff] %v475
    // Predicated region
    $region30: #{tpu_custom_call.1} parent=1 // pred_check
      _
    $region31: #{tpu_custom_call.1} parent=1 // pred_check_branch
      %485 = sbr.rel (0) target = $region33
    $region32: #{tpu_custom_call.1} parent=1 // pred_region
      %s487 = ssub.s32 1024, 1024
      %488 = vsyncadd [#allocation3], %s487
      %s489 = sshll.u32 [#allocation2], 4
      %s490 = int_to_ptr.vmem [resolvable:$true] %s489
      %495 = dma.vmem_to_hbm [thread:$0]  %s490, 1024, %s7, [#allocation3], 128, 128, 8
    $region33: #{tpu_custom_call.1} parent=1 // pred_fallthru
      _
    // Predicated region
    $region34: #{tpu_custom_call.1} parent=1 // pred_check
      _
    $region35: #{tpu_custom_call.1} parent=1 // pred_check_branch
      %497 = sbr.rel (0) target = $region37
    $region36: #{tpu_custom_call.1} parent=1 // pred_region
      %498 = dma.done [#allocation3], 1024
    $region37: #{tpu_custom_call.1} parent=1 // pred_fallthru
      _
    %499 = vsyncpa [#allocation3], 1

</llo_original>
